<compile_context>
chip_gen: v7x
topology: tpu7x:2x2x1
jax: 0.10.0
libtpu: 0.0.40
codegen_flags: <defaults>
</compile_context>

<pallas_src>
import functools

import jax
import jax.numpy as jnp
from jax.experimental import pallas as pl
from jax.experimental.pallas import tpu as pltpu

EPS = 1e-5


def rblock_kernel(x_ref, gamma_ref, beta_ref, mean_ref, var_ref, w_ref,
                  pos_ref, o_ref, *, H, W):
    # x_ref / o_ref: (C_pad, P) f32 with P = images_per_step * H * W
    #   sublanes = channels (padded to 8), lanes = flattened (image, h, w).
    # w_ref: (3, C_pad, 3*C_pad)  -- w_ref[kh][co, kw*C_pad + ci]
    # pos_ref: (2, P) int32       -- row 0 = h index per lane, row 1 = w index.
    Cp, P = x_ref.shape
    x = x_ref[...]

    # ---- BN (inference) + ReLU: per-channel scale/bias, dense VPU math ----
    inv_std = jax.lax.rsqrt(var_ref[...] + EPS)            # (Cp, 1)
    scale = gamma_ref[...] * inv_std                       # (Cp, 1)
    bias = beta_ref[...] - mean_ref[...] * scale           # (Cp, 1)
    a = jnp.maximum(x * scale + bias, 0.0)                 # (Cp, P)

    # Boundary masks for the 3x3 neighbourhood (precomputed h/w lane indices,
    # so no vector integer div/mod in-kernel).
    h_idx = pos_ref[0:1, :]                                # (1, P)
    w_idx = pos_ref[1:2, :]                                # (1, P)
    h_ok = {-1: h_idx >= 1, 0: None, 1: h_idx < H - 1}
    w_ok = {-1: w_idx >= 1, 0: None, 1: w_idx < W - 1}

    def tap(src, dh, dw, pad_val):
        # src shifted so that tap[c, (n,h,w)] = src[c, (n, h+dh, w+dw)],
        # out-of-image positions replaced by pad_val.  The roll is a lane
        # rotation (XLU); wrap-around only lands on masked positions.
        d = dh * W + dw
        r = src if d == 0 else pltpu.roll(src, shift=(-d) % P, axis=1)
        hm, wm = h_ok[dh], w_ok[dw]
        if hm is None and wm is None:
            return r
        m = hm if wm is None else (wm if hm is None else jnp.logical_and(hm, wm))
        return jnp.where(m, r, pad_val)

    # ---- branch 1: Conv3x3 (pad=1, stride=1, no bias) on BN/ReLU output ----
    # Per kh row, fuse the 3 kw taps along the contraction dim (K = 3*C_pad)
    # with a sublane-aligned concat, then one MXU dot per row.
    acc = None
    for kh in range(3):
        dh = kh - 1
        pk = jnp.concatenate(
            [tap(a, dh, -1, 0.0), tap(a, dh, 0, 0.0), tap(a, dh, 1, 0.0)],
            axis=0)                                        # (3*Cp, P)
        part = jnp.dot(w_ref[kh], pk, preferred_element_type=jnp.float32)
        acc = part if acc is None else acc + part          # (Cp, P)

    # ---- branch 2: MaxPool 3x3, stride=1, pad=1 (on raw input, -inf pad) ----
    mp = x
    for dh in (-1, 0, 1):
        for dw in (-1, 0, 1):
            if dh == 0 and dw == 0:
                continue
            mp = jnp.maximum(mp, tap(x, dh, dw, -jnp.inf))

    # ---- comb = add; single dense lane-aligned store ----
    o_ref[...] = acc + mp


def rblock(x_nchw, gamma, beta, running_mean, running_var, w_oihw, *, nb=None):
    """RBlock forward. x_nchw: (N, C, H, W) f32. Returns (N, C, H, W) f32."""
    N, C, H, W = x_nchw.shape
    HW = H * W
    C_pad = max(8, ((C + 7) // 8) * 8)          # round channels up to sublanes

    # Lane-dense internal layout: (C_pad, N*H*W).
    x_cp = jnp.transpose(x_nchw, (1, 0, 2, 3)).reshape(C, N * HW)
    x_cp = jnp.pad(x_cp.astype(jnp.float32), ((0, C_pad - C), (0, 0)))

    def pad_param(v, fill):
        v = v.astype(jnp.float32).reshape(C, 1)
        return jnp.pad(v, ((0, C_pad - C), (0, 0)), constant_values=fill)

    g = pad_param(gamma, 1.0)
    b = pad_param(beta, 0.0)
    m = pad_param(running_mean, 0.0)
    vv = pad_param(running_var, 1.0)

    # Conv weight -> dense (3, C_pad, 3*C_pad) slab:
    #   w3[kh, co, kw*C_pad + ci] = w_oihw[co, ci, kh, kw]  (zero padded).
    w_p = jnp.zeros((C_pad, C_pad, 3, 3), jnp.float32)
    w_p = w_p.at[:C, :C].set(w_oihw.astype(jnp.float32))
    w3 = jnp.transpose(w_p, (2, 0, 3, 1)).reshape(3, C_pad, 3 * C_pad)

    # Images per grid step: as many as comfortably fit a few MiB of VMEM.
    if nb is None:
        per_img_bytes = C_pad * HW * 4
        nb = max(1, min(N, (2 * 1024 * 1024) // max(per_img_bytes, 1)))
        while N % nb:
            nb -= 1
    P = nb * HW
    grid = (N // nb,)

    # Per-lane (h, w) indices for the boundary masks (same for every block).
    lane = jnp.arange(P, dtype=jnp.int32)
    q = lane % HW
    hw_pos = jnp.stack([q // W, q % W], axis=0)            # (2, P) int32

    out = pl.pallas_call(
        functools.partial(rblock_kernel, H=H, W=W),
        out_shape=jax.ShapeDtypeStruct((C_pad, N * HW), jnp.float32),
        grid_spec=pltpu.PrefetchScalarGridSpec(
            num_scalar_prefetch=0,
            grid=grid,
            in_specs=[
                pl.BlockSpec((C_pad, P), lambda i: (0, i)),            # x
                pl.BlockSpec((C_pad, 1), lambda i: (0, 0)),            # gamma
                pl.BlockSpec((C_pad, 1), lambda i: (0, 0)),            # beta
                pl.BlockSpec((C_pad, 1), lambda i: (0, 0)),            # mean
                pl.BlockSpec((C_pad, 1), lambda i: (0, 0)),            # var
                pl.BlockSpec((3, C_pad, 3 * C_pad), lambda i: (0, 0, 0)),  # W
                pl.BlockSpec((2, P), lambda i: (0, 0)),                # h/w idx
            ],
            out_specs=pl.BlockSpec((C_pad, P), lambda i: (0, i)),
        ),
        compiler_params=pltpu.CompilerParams(dimension_semantics=("parallel",)),
    )(x_cp, g, b, m, vv, w3, hw_pos)

    out = out[:C].reshape(C, N, H, W)
    return jnp.transpose(out, (1, 0, 2, 3))                # back to NCHW


def rblock_reference(x_nchw, gamma, beta, mean, var, w_oihw):
    """Pure-JAX reference (NCHW)."""
    C = x_nchw.shape[1]
    g = gamma.reshape(1, C, 1, 1)
    b = beta.reshape(1, C, 1, 1)
    mu = mean.reshape(1, C, 1, 1)
    vr = var.reshape(1, C, 1, 1)
    a = jnp.maximum((x_nchw - mu) * jax.lax.rsqrt(vr + EPS) * g + b, 0.0)
    conv = jax.lax.conv_general_dilated(
        a, w_oihw, window_strides=(1, 1), padding=((1, 1), (1, 1)),
        dimension_numbers=("NCHW", "OIHW", "NCHW"))
    mp = jax.lax.reduce_window(
        x_nchw, -jnp.inf, jax.lax.max,
        window_dimensions=(1, 1, 3, 3), window_strides=(1, 1, 1, 1),
        padding=((0, 0), (0, 0), (1, 1), (1, 1)))
    return conv + mp


if __name__ == "__main__":
    N, C, H, W = 2, 4, 16, 16
    key = jax.random.PRNGKey(0)
    k1, k2, k3, k4, k5, k6 = jax.random.split(key, 6)

    x_nchw = jax.random.normal(k1, (N, C, H, W), jnp.float32)
    gamma = 1.0 + 0.1 * jax.random.normal(k2, (C,), jnp.float32)
    beta = 0.1 * jax.random.normal(k3, (C,), jnp.float32)
    running_mean = 0.1 * jax.random.normal(k4, (C,), jnp.float32)
    running_var = 0.5 + 0.5 * jax.nn.softplus(jax.random.normal(k5, (C,), jnp.float32))
    w_oihw = 0.1 * jax.random.normal(k6, (C, C, 3, 3), jnp.float32)  # Conv2d OIHW

    out = rblock(x_nchw, gamma, beta, running_mean, running_var, w_oihw)
    out = jax.block_until_ready(out)

    ref = rblock_reference(x_nchw, gamma, beta, running_mean, running_var, w_oihw)
    assert out.shape == x_nchw.shape
    max_err = float(jnp.max(jnp.abs(out - ref)))
    assert jnp.allclose(out, ref, atol=1e-4, rtol=1e-4), max_err
    print("KERNEL_OK")
</pallas_src>

<mosaic_0001>
module attributes {stable_mosaic.version = 11 : i64} {
  func.func @rblock_kernel(%arg0: i32, %arg1: memref<8x512xf32, #tpu.memory_space<vmem>>, %arg2: memref<8x1xf32, #tpu.memory_space<vmem>>, %arg3: memref<8x1xf32, #tpu.memory_space<vmem>>, %arg4: memref<8x1xf32, #tpu.memory_space<vmem>>, %arg5: memref<8x1xf32, #tpu.memory_space<vmem>>, %arg6: memref<3x8x24xf32, #tpu.memory_space<vmem>>, %arg7: memref<2x512xi32, #tpu.memory_space<vmem>>, %arg8: memref<8x512xf32, #tpu.memory_space<vmem>>) attributes {dimension_semantics = [#tpu.dimension_semantics<parallel>], iteration_bounds = array<i64: 1>, scalar_prefetch = 0 : i64, scratch_operands = 0 : i64, tpu.core_type = #tpu.core_type<tc>, window_params = [{transform_indices = @transform_0, window_bounds = array<i64: 8, 512>}, {pipeline_mode = #tpu.pipeline_mode<synchronous>, transform_indices = @transform_1, window_bounds = array<i64: 8, 1>}, {pipeline_mode = #tpu.pipeline_mode<synchronous>, transform_indices = @transform_2, window_bounds = array<i64: 8, 1>}, {pipeline_mode = #tpu.pipeline_mode<synchronous>, transform_indices = @transform_3, window_bounds = array<i64: 8, 1>}, {pipeline_mode = #tpu.pipeline_mode<synchronous>, transform_indices = @transform_4, window_bounds = array<i64: 8, 1>}, {pipeline_mode = #tpu.pipeline_mode<synchronous>, transform_indices = @transform_5, window_bounds = array<i64: 3, 8, 24>}, {pipeline_mode = #tpu.pipeline_mode<synchronous>, transform_indices = @transform_6, window_bounds = array<i64: 2, 512>}, {transform_indices = @transform_7, window_bounds = array<i64: 8, 512>}]} {
    %c0 = arith.constant 0 : index
    %c0_0 = arith.constant 0 : index
    %0 = vector.load %arg1[%c0, %c0_0] : memref<8x512xf32, #tpu.memory_space<vmem>>, vector<8x512xf32>
    %c0_1 = arith.constant 0 : index
    %c0_2 = arith.constant 0 : index
    %1 = vector.load %arg5[%c0_1, %c0_2] : memref<8x1xf32, #tpu.memory_space<vmem>>, vector<8x1xf32>
    %cst = arith.constant 9.99999974E-6 : f32
    %2 = vector.broadcast %cst : f32 to vector<8x1xf32>
    %3 = arith.addf %1, %2 : vector<8x1xf32>
    %4 = math.rsqrt %3 : vector<8x1xf32>
    %c0_3 = arith.constant 0 : index
    %c0_4 = arith.constant 0 : index
    %5 = vector.load %arg2[%c0_3, %c0_4] : memref<8x1xf32, #tpu.memory_space<vmem>>, vector<8x1xf32>
    %6 = arith.mulf %5, %4 : vector<8x1xf32>
    %c0_5 = arith.constant 0 : index
    %c0_6 = arith.constant 0 : index
    %7 = vector.load %arg3[%c0_5, %c0_6] : memref<8x1xf32, #tpu.memory_space<vmem>>, vector<8x1xf32>
    %c0_7 = arith.constant 0 : index
    %c0_8 = arith.constant 0 : index
    %8 = vector.load %arg4[%c0_7, %c0_8] : memref<8x1xf32, #tpu.memory_space<vmem>>, vector<8x1xf32>
    %9 = arith.mulf %8, %6 : vector<8x1xf32>
    %10 = arith.subf %7, %9 : vector<8x1xf32>
    %11 = vector.broadcast %6 : vector<8x1xf32> to vector<8x512xf32>
    %12 = arith.mulf %0, %11 : vector<8x512xf32>
    %13 = vector.broadcast %10 : vector<8x1xf32> to vector<8x512xf32>
    %14 = arith.addf %12, %13 : vector<8x512xf32>
    %cst_9 = arith.constant 0.000000e+00 : f32
    %15 = vector.broadcast %cst_9 : f32 to vector<8x512xf32>
    %16 = arith.maximumf %14, %15 : vector<8x512xf32>
    %c0_10 = arith.constant 0 : index
    %c0_11 = arith.constant 0 : index
    %17 = vector.load %arg7[%c0_10, %c0_11] : memref<2x512xi32, #tpu.memory_space<vmem>>, vector<1x512xi32>
    %c1 = arith.constant 1 : index
    %c0_12 = arith.constant 0 : index
    %18 = vector.load %arg7[%c1, %c0_12] : memref<2x512xi32, #tpu.memory_space<vmem>>, vector<1x512xi32>
    %c1_i32 = arith.constant 1 : i32
    %19 = vector.broadcast %c1_i32 : i32 to vector<1x512xi32>
    %20 = arith.cmpi sge, %17, %19 : vector<1x512xi32>
    %c15_i32 = arith.constant 15 : i32
    %21 = vector.broadcast %c15_i32 : i32 to vector<1x512xi32>
    %22 = arith.cmpi slt, %17, %21 : vector<1x512xi32>
    %c1_i32_13 = arith.constant 1 : i32
    %23 = vector.broadcast %c1_i32_13 : i32 to vector<1x512xi32>
    %24 = arith.cmpi sge, %18, %23 : vector<1x512xi32>
    %c15_i32_14 = arith.constant 15 : i32
    %25 = vector.broadcast %c15_i32_14 : i32 to vector<1x512xi32>
    %26 = arith.cmpi slt, %18, %25 : vector<1x512xi32>
    %c17_i32 = arith.constant 17 : i32
    %27 = tpu.dynamic_rotate %16 by %c17_i32 dim 1 : vector<8x512xf32>, i32 -> vector<8x512xf32>
    %28 = arith.andi %20, %24 : vector<1x512xi1>
    %cst_15 = arith.constant 0.000000e+00 : f32
    %29 = vector.shape_cast %28 : vector<1x512xi1> to vector<1x512xi1>
    %30 = vector.broadcast %29 : vector<1x512xi1> to vector<8x512xi1>
    %31 = vector.broadcast %cst_15 : f32 to vector<8x512xf32>
    %32 = arith.select %30, %27, %31 : vector<8x512xi1>, vector<8x512xf32>
    %c16_i32 = arith.constant 16 : i32
    %33 = tpu.dynamic_rotate %16 by %c16_i32 dim 1 : vector<8x512xf32>, i32 -> vector<8x512xf32>
    %cst_16 = arith.constant 0.000000e+00 : f32
    %34 = vector.shape_cast %20 : vector<1x512xi1> to vector<1x512xi1>
    %35 = vector.broadcast %34 : vector<1x512xi1> to vector<8x512xi1>
    %36 = vector.broadcast %cst_16 : f32 to vector<8x512xf32>
    %37 = arith.select %35, %33, %36 : vector<8x512xi1>, vector<8x512xf32>
    %c15_i32_17 = arith.constant 15 : i32
    %38 = tpu.dynamic_rotate %16 by %c15_i32_17 dim 1 : vector<8x512xf32>, i32 -> vector<8x512xf32>
    %39 = arith.andi %20, %26 : vector<1x512xi1>
    %cst_18 = arith.constant 0.000000e+00 : f32
    %40 = vector.shape_cast %39 : vector<1x512xi1> to vector<1x512xi1>
    %41 = vector.broadcast %40 : vector<1x512xi1> to vector<8x512xi1>
    %42 = vector.broadcast %cst_18 : f32 to vector<8x512xf32>
    %43 = arith.select %41, %38, %42 : vector<8x512xi1>, vector<8x512xf32>
    %44 = tpu.concatenate %32, %37, %43 in 0 : vector<8x512xf32>, vector<8x512xf32>, vector<8x512xf32> -> vector<24x512xf32>
    %c0_19 = arith.constant 0 : index
    %c0_20 = arith.constant 0 : index
    %c0_21 = arith.constant 0 : index
    %45 = vector.load %arg6[%c0_19, %c0_20, %c0_21] : memref<3x8x24xf32, #tpu.memory_space<vmem>>, vector<1x8x24xf32>
    %46 = vector.shape_cast %45 : vector<1x8x24xf32> to vector<8x24xf32>
    %cst_22 = arith.constant dense<0.000000e+00> : vector<8x512xf32>
    %47 = tpu.matmul %46, %44, %cst_22 {dimension_numbers = #tpu.dot_dimension_numbers<[1], [0], [0], [1], [0, 0, 1, 1], [], []>} : vector<8x24xf32>, vector<24x512xf32>, vector<8x512xf32> -> vector<8x512xf32>
    %c1_i32_23 = arith.constant 1 : i32
    %48 = tpu.dynamic_rotate %16 by %c1_i32_23 dim 1 : vector<8x512xf32>, i32 -> vector<8x512xf32>
    %cst_24 = arith.constant 0.000000e+00 : f32
    %49 = vector.shape_cast %24 : vector<1x512xi1> to vector<1x512xi1>
    %50 = vector.broadcast %49 : vector<1x512xi1> to vector<8x512xi1>
    %51 = vector.broadcast %cst_24 : f32 to vector<8x512xf32>
    %52 = arith.select %50, %48, %51 : vector<8x512xi1>, vector<8x512xf32>
    %c511_i32 = arith.constant 511 : i32
    %53 = tpu.dynamic_rotate %16 by %c511_i32 dim 1 : vector<8x512xf32>, i32 -> vector<8x512xf32>
    %cst_25 = arith.constant 0.000000e+00 : f32
    %54 = vector.shape_cast %26 : vector<1x512xi1> to vector<1x512xi1>
    %55 = vector.broadcast %54 : vector<1x512xi1> to vector<8x512xi1>
    %56 = vector.broadcast %cst_25 : f32 to vector<8x512xf32>
    %57 = arith.select %55, %53, %56 : vector<8x512xi1>, vector<8x512xf32>
    %58 = tpu.concatenate %52, %16, %57 in 0 : vector<8x512xf32>, vector<8x512xf32>, vector<8x512xf32> -> vector<24x512xf32>
    %c1_26 = arith.constant 1 : index
    %c0_27 = arith.constant 0 : index
    %c0_28 = arith.constant 0 : index
    %59 = vector.load %arg6[%c1_26, %c0_27, %c0_28] : memref<3x8x24xf32, #tpu.memory_space<vmem>>, vector<1x8x24xf32>
    %60 = vector.shape_cast %59 : vector<1x8x24xf32> to vector<8x24xf32>
    %cst_29 = arith.constant dense<0.000000e+00> : vector<8x512xf32>
    %61 = tpu.matmul %60, %58, %cst_29 {dimension_numbers = #tpu.dot_dimension_numbers<[1], [0], [0], [1], [0, 0, 1, 1], [], []>} : vector<8x24xf32>, vector<24x512xf32>, vector<8x512xf32> -> vector<8x512xf32>
    %62 = arith.addf %47, %61 : vector<8x512xf32>
    %c497_i32 = arith.constant 497 : i32
    %63 = tpu.dynamic_rotate %16 by %c497_i32 dim 1 : vector<8x512xf32>, i32 -> vector<8x512xf32>
    %64 = arith.andi %22, %24 : vector<1x512xi1>
    %cst_30 = arith.constant 0.000000e+00 : f32
    %65 = vector.shape_cast %64 : vector<1x512xi1> to vector<1x512xi1>
    %66 = vector.broadcast %65 : vector<1x512xi1> to vector<8x512xi1>
    %67 = vector.broadcast %cst_30 : f32 to vector<8x512xf32>
    %68 = arith.select %66, %63, %67 : vector<8x512xi1>, vector<8x512xf32>
    %c496_i32 = arith.constant 496 : i32
    %69 = tpu.dynamic_rotate %16 by %c496_i32 dim 1 : vector<8x512xf32>, i32 -> vector<8x512xf32>
    %cst_31 = arith.constant 0.000000e+00 : f32
    %70 = vector.shape_cast %22 : vector<1x512xi1> to vector<1x512xi1>
    %71 = vector.broadcast %70 : vector<1x512xi1> to vector<8x512xi1>
    %72 = vector.broadcast %cst_31 : f32 to vector<8x512xf32>
    %73 = arith.select %71, %69, %72 : vector<8x512xi1>, vector<8x512xf32>
    %c495_i32 = arith.constant 495 : i32
    %74 = tpu.dynamic_rotate %16 by %c495_i32 dim 1 : vector<8x512xf32>, i32 -> vector<8x512xf32>
    %75 = arith.andi %22, %26 : vector<1x512xi1>
    %cst_32 = arith.constant 0.000000e+00 : f32
    %76 = vector.shape_cast %75 : vector<1x512xi1> to vector<1x512xi1>
    %77 = vector.broadcast %76 : vector<1x512xi1> to vector<8x512xi1>
    %78 = vector.broadcast %cst_32 : f32 to vector<8x512xf32>
    %79 = arith.select %77, %74, %78 : vector<8x512xi1>, vector<8x512xf32>
    %80 = tpu.concatenate %68, %73, %79 in 0 : vector<8x512xf32>, vector<8x512xf32>, vector<8x512xf32> -> vector<24x512xf32>
    %c2 = arith.constant 2 : index
    %c0_33 = arith.constant 0 : index
    %c0_34 = arith.constant 0 : index
    %81 = vector.load %arg6[%c2, %c0_33, %c0_34] : memref<3x8x24xf32, #tpu.memory_space<vmem>>, vector<1x8x24xf32>
    %82 = vector.shape_cast %81 : vector<1x8x24xf32> to vector<8x24xf32>
    %cst_35 = arith.constant dense<0.000000e+00> : vector<8x512xf32>
    %83 = tpu.matmul %82, %80, %cst_35 {dimension_numbers = #tpu.dot_dimension_numbers<[1], [0], [0], [1], [0, 0, 1, 1], [], []>} : vector<8x24xf32>, vector<24x512xf32>, vector<8x512xf32> -> vector<8x512xf32>
    %84 = arith.addf %62, %83 : vector<8x512xf32>
    %c17_i32_36 = arith.constant 17 : i32
    %85 = tpu.dynamic_rotate %0 by %c17_i32_36 dim 1 : vector<8x512xf32>, i32 -> vector<8x512xf32>
    %86 = arith.andi %20, %24 : vector<1x512xi1>
    %cst_37 = arith.constant 0xFF800000 : f32
    %87 = vector.shape_cast %86 : vector<1x512xi1> to vector<1x512xi1>
    %88 = vector.broadcast %87 : vector<1x512xi1> to vector<8x512xi1>
    %89 = vector.broadcast %cst_37 : f32 to vector<8x512xf32>
    %90 = arith.select %88, %85, %89 : vector<8x512xi1>, vector<8x512xf32>
    %91 = arith.maximumf %0, %90 : vector<8x512xf32>
    %c16_i32_38 = arith.constant 16 : i32
    %92 = tpu.dynamic_rotate %0 by %c16_i32_38 dim 1 : vector<8x512xf32>, i32 -> vector<8x512xf32>
    %cst_39 = arith.constant 0xFF800000 : f32
    %93 = vector.shape_cast %20 : vector<1x512xi1> to vector<1x512xi1>
    %94 = vector.broadcast %93 : vector<1x512xi1> to vector<8x512xi1>
    %95 = vector.broadcast %cst_39 : f32 to vector<8x512xf32>
    %96 = arith.select %94, %92, %95 : vector<8x512xi1>, vector<8x512xf32>
    %97 = arith.maximumf %91, %96 : vector<8x512xf32>
    %c15_i32_40 = arith.constant 15 : i32
    %98 = tpu.dynamic_rotate %0 by %c15_i32_40 dim 1 : vector<8x512xf32>, i32 -> vector<8x512xf32>
    %99 = arith.andi %20, %26 : vector<1x512xi1>
    %cst_41 = arith.constant 0xFF800000 : f32
    %100 = vector.shape_cast %99 : vector<1x512xi1> to vector<1x512xi1>
    %101 = vector.broadcast %100 : vector<1x512xi1> to vector<8x512xi1>
    %102 = vector.broadcast %cst_41 : f32 to vector<8x512xf32>
    %103 = arith.select %101, %98, %102 : vector<8x512xi1>, vector<8x512xf32>
    %104 = arith.maximumf %97, %103 : vector<8x512xf32>
    %c1_i32_42 = arith.constant 1 : i32
    %105 = tpu.dynamic_rotate %0 by %c1_i32_42 dim 1 : vector<8x512xf32>, i32 -> vector<8x512xf32>
    %cst_43 = arith.constant 0xFF800000 : f32
    %106 = vector.shape_cast %24 : vector<1x512xi1> to vector<1x512xi1>
    %107 = vector.broadcast %106 : vector<1x512xi1> to vector<8x512xi1>
    %108 = vector.broadcast %cst_43 : f32 to vector<8x512xf32>
    %109 = arith.select %107, %105, %108 : vector<8x512xi1>, vector<8x512xf32>
    %110 = arith.maximumf %104, %109 : vector<8x512xf32>
    %c511_i32_44 = arith.constant 511 : i32
    %111 = tpu.dynamic_rotate %0 by %c511_i32_44 dim 1 : vector<8x512xf32>, i32 -> vector<8x512xf32>
    %cst_45 = arith.constant 0xFF800000 : f32
    %112 = vector.shape_cast %26 : vector<1x512xi1> to vector<1x512xi1>
    %113 = vector.broadcast %112 : vector<1x512xi1> to vector<8x512xi1>
    %114 = vector.broadcast %cst_45 : f32 to vector<8x512xf32>
    %115 = arith.select %113, %111, %114 : vector<8x512xi1>, vector<8x512xf32>
    %116 = arith.maximumf %110, %115 : vector<8x512xf32>
    %c497_i32_46 = arith.constant 497 : i32
    %117 = tpu.dynamic_rotate %0 by %c497_i32_46 dim 1 : vector<8x512xf32>, i32 -> vector<8x512xf32>
    %118 = arith.andi %22, %24 : vector<1x512xi1>
    %cst_47 = arith.constant 0xFF800000 : f32
    %119 = vector.shape_cast %118 : vector<1x512xi1> to vector<1x512xi1>
    %120 = vector.broadcast %119 : vector<1x512xi1> to vector<8x512xi1>
    %121 = vector.broadcast %cst_47 : f32 to vector<8x512xf32>
    %122 = arith.select %120, %117, %121 : vector<8x512xi1>, vector<8x512xf32>
    %123 = arith.maximumf %116, %122 : vector<8x512xf32>
    %c496_i32_48 = arith.constant 496 : i32
    %124 = tpu.dynamic_rotate %0 by %c496_i32_48 dim 1 : vector<8x512xf32>, i32 -> vector<8x512xf32>
    %cst_49 = arith.constant 0xFF800000 : f32
    %125 = vector.shape_cast %22 : vector<1x512xi1> to vector<1x512xi1>
    %126 = vector.broadcast %125 : vector<1x512xi1> to vector<8x512xi1>
    %127 = vector.broadcast %cst_49 : f32 to vector<8x512xf32>
    %128 = arith.select %126, %124, %127 : vector<8x512xi1>, vector<8x512xf32>
    %129 = arith.maximumf %123, %128 : vector<8x512xf32>
    %c495_i32_50 = arith.constant 495 : i32
    %130 = tpu.dynamic_rotate %0 by %c495_i32_50 dim 1 : vector<8x512xf32>, i32 -> vector<8x512xf32>
    %131 = arith.andi %22, %26 : vector<1x512xi1>
    %cst_51 = arith.constant 0xFF800000 : f32
    %132 = vector.shape_cast %131 : vector<1x512xi1> to vector<1x512xi1>
    %133 = vector.broadcast %132 : vector<1x512xi1> to vector<8x512xi1>
    %134 = vector.broadcast %cst_51 : f32 to vector<8x512xf32>
    %135 = arith.select %133, %130, %134 : vector<8x512xi1>, vector<8x512xf32>
    %136 = arith.maximumf %129, %135 : vector<8x512xf32>
    %137 = arith.addf %84, %136 : vector<8x512xf32>
    %c0_52 = arith.constant 0 : index
    %c0_53 = arith.constant 0 : index
    %138 = vector.load %arg8[%c0_52, %c0_53] : memref<8x512xf32, #tpu.memory_space<vmem>>, vector<8x512xf32>
    tpu.vector_store %arg8[%c0_52, %c0_53], %137 {strides = array<i32>} : memref<8x512xf32, #tpu.memory_space<vmem>>, vector<8x512xf32>,
    return
  }
  func.func @transform_0(%arg0: i32) -> (i32, i32) {
    %c0_i32 = arith.constant 0 : i32
    %c0_i32_0 = arith.constant 0 : i32
    return %c0_i32, %arg0 : i32, i32
  }
  func.func @transform_1(%arg0: i32) -> (i32, i32) {
    %c0_i32 = arith.constant 0 : i32
    %c0_i32_0 = arith.constant 0 : i32
    %c0_i32_1 = arith.constant 0 : i32
    return %c0_i32, %c0_i32_0 : i32, i32
  }
  func.func @transform_2(%arg0: i32) -> (i32, i32) {
    %c0_i32 = arith.constant 0 : i32
    %c0_i32_0 = arith.constant 0 : i32
    %c0_i32_1 = arith.constant 0 : i32
    return %c0_i32, %c0_i32_0 : i32, i32
  }
  func.func @transform_3(%arg0: i32) -> (i32, i32) {
    %c0_i32 = arith.constant 0 : i32
    %c0_i32_0 = arith.constant 0 : i32
    %c0_i32_1 = arith.constant 0 : i32
    return %c0_i32, %c0_i32_0 : i32, i32
  }
  func.func @transform_4(%arg0: i32) -> (i32, i32) {
    %c0_i32 = arith.constant 0 : i32
    %c0_i32_0 = arith.constant 0 : i32
    %c0_i32_1 = arith.constant 0 : i32
    return %c0_i32, %c0_i32_0 : i32, i32
  }
  func.func @transform_5(%arg0: i32) -> (i32, i32, i32) {
    %c0_i32 = arith.constant 0 : i32
    %c0_i32_0 = arith.constant 0 : i32
    %c0_i32_1 = arith.constant 0 : i32
    %c0_i32_2 = arith.constant 0 : i32
    return %c0_i32, %c0_i32_0, %c0_i32_1 : i32, i32, i32
  }
  func.func @transform_6(%arg0: i32) -> (i32, i32) {
    %c0_i32 = arith.constant 0 : i32
    %c0_i32_0 = arith.constant 0 : i32
    %c0_i32_1 = arith.constant 0 : i32
    return %c0_i32, %c0_i32_0 : i32, i32
  }
  func.func @transform_7(%arg0: i32) -> (i32, i32) {
    %c0_i32 = arith.constant 0 : i32
    %c0_i32_0 = arith.constant 0 : i32
    return %c0_i32, %arg0 : i32, i32
  }
}

</mosaic_0001>

<llo_original>
// kernel: tpu_custom_call.1
$region0: #{tpu_custom_call.1}
  #allocation0 [shape = 'u32[]', space=smem, size = 0x4, offset = 0x4, fixed_abs, tag = 'smem constant byte address 0x4 - core index']
  #allocation1 [shape = 'u32[144,128]{1,0:T(1,128)}', space=vmem, size = 0x12000, scoped, tag = 'internal scratch']
  %s0 = inlined_call_operand.vmem [shape: f32[8,512], index: 0, kind: input, shape index: {}]
  %s1 = inlined_call_operand.vmem [shape: f32[8,1], index: 1, kind: input, shape index: {}]
  %s2 = inlined_call_operand.vmem [shape: f32[8,1], index: 2, kind: input, shape index: {}]
  %s3 = inlined_call_operand.vmem [shape: f32[8,1], index: 3, kind: input, shape index: {}]
  %s4 = inlined_call_operand.vmem [shape: f32[8,1], index: 4, kind: input, shape index: {}]
  %s5 = inlined_call_operand.hbm [shape: f32[3,8,24], index: 5, kind: input, shape index: {}]
  %s6 = inlined_call_operand.vmem [shape: s32[2,512], index: 6, kind: input, shape index: {}]
  %s7 = inlined_call_operand.hbm [shape: f32[8,512], index: 7, kind: output, shape index: {}]
  %s8 = sld [smem:[#allocation0]]
  $region42: #{tpu_custom_call.1} parent=0
    _
  %s10 = ssub.s32 1, %s8
  %s11 = scalar_select 0, %s10, %s8
  $region1: #{tpu_custom_call.1} parent=0
    #allocation2 [shape = 'u8[12288]{0}', space=vmem, size = 0x3000, scoped, tag = 'input window, operand 5, single buffered']
    #allocation3 [shape = 's32[1]{0}', space=sflag, size = 0x4, scoped, tag = 'scoped memory for tpu_custom_call.1']
    #allocation4 [shape = 's32[1]{0}', space=sflag, size = 0x4, scoped, tag = 'scoped memory for tpu_custom_call.1']
    #allocation5 [shape = 'u8[16384]{0}', space=vmem, size = 0x4000, scoped, tag = 'output window, operand 0, single buffered']
    %12 = vsyncpa [#allocation3], 0
    %13 = vsyncpa [#allocation4], 0
    // Predicated region
    $region2: #{tpu_custom_call.1} parent=1 // pred_check
      _
    $region3: #{tpu_custom_call.1} parent=1 // pred_check_branch
      %15 = sbr.rel (0) target = $region5
    $region4: #{tpu_custom_call.1} parent=1 // pred_region
      _
    $region5: #{tpu_custom_call.1} parent=1 // pred_fallthru
      _
    // Predicated region
    $region6: #{tpu_custom_call.1} parent=1 // pred_check
      _
    $region7: #{tpu_custom_call.1} parent=1 // pred_check_branch
      %17 = sbr.rel (0) target = $region9
    $region8: #{tpu_custom_call.1} parent=1 // pred_region
      _
    $region9: #{tpu_custom_call.1} parent=1 // pred_fallthru
      _
    // Predicated region
    $region10: #{tpu_custom_call.1} parent=1 // pred_check
      _
    $region11: #{tpu_custom_call.1} parent=1 // pred_check_branch
      %19 = sbr.rel (0) target = $region13
    $region12: #{tpu_custom_call.1} parent=1 // pred_region
      _
    $region13: #{tpu_custom_call.1} parent=1 // pred_fallthru
      _
    // Predicated region
    $region14: #{tpu_custom_call.1} parent=1 // pred_check
      _
    $region15: #{tpu_custom_call.1} parent=1 // pred_check_branch
      %21 = sbr.rel (0) target = $region17
    $region16: #{tpu_custom_call.1} parent=1 // pred_region
      _
    $region17: #{tpu_custom_call.1} parent=1 // pred_fallthru
      _
    // Predicated region
    $region18: #{tpu_custom_call.1} parent=1 // pred_check
      _
    $region19: #{tpu_custom_call.1} parent=1 // pred_check_branch
      %23 = sbr.rel (0) target = $region21
    $region20: #{tpu_custom_call.1} parent=1 // pred_region
      _
    $region21: #{tpu_custom_call.1} parent=1 // pred_fallthru
      _
    // Predicated region
    $region22: #{tpu_custom_call.1} parent=1 // pred_check
      _
    $region23: #{tpu_custom_call.1} parent=1 // pred_check_branch
      %25 = sbr.rel (0) target = $region25
    $region24: #{tpu_custom_call.1} parent=1 // pred_region
      %s27 = ssub.s32 384, 384
      %28 = vsyncadd [#allocation3], %s27
      %s29 = sshll.u32 [#allocation2], 4
      %s30 = int_to_ptr.vmem [resolvable:$true] %s29
      %35 = dma.hbm_to_vmem [thread:$0]  %s5, 384, %s30, [#allocation3], 128, 128, 8
    $region25: #{tpu_custom_call.1} parent=1 // pred_fallthru
      _
    // Predicated region
    $region26: #{tpu_custom_call.1} parent=1 // pred_check
      _
    $region27: #{tpu_custom_call.1} parent=1 // pred_check_branch
      %37 = sbr.rel (0) target = $region29
    $region28: #{tpu_custom_call.1} parent=1 // pred_region
      _
    $region29: #{tpu_custom_call.1} parent=1 // pred_fallthru
      _
    // Predicated region
    $region30: #{tpu_custom_call.1} parent=1 // pred_check
      _
    $region31: #{tpu_custom_call.1} parent=1 // pred_check_branch
      %39 = sbr.rel (0) target = $region33
    $region32: #{tpu_custom_call.1} parent=1 // pred_region
      %40 = dma.done [#allocation3], 384
    $region33: #{tpu_custom_call.1} parent=1 // pred_fallthru
      _
    %v41 = vld [vmem:[%s0] sm:$0xff]
    %v42 = vld [vmem:[%s0 + $0x8] sm:$0xff]
    %v43 = vld [vmem:[%s0 + $0x10] sm:$0xff]
    %v44 = vld [vmem:[%s0 + $0x18] sm:$0xff]
    %v45 = vld [vmem:[%s4] sm:$0xff]
    %v46 = vadd.f32 %v45, 1e-05
    %v47 = vrsqrt.pop %v46
    %v48 = vld [vmem:[%s1] sm:$0xff]
    %v49 = vmul.f32 %v48, %v47
    %v50 = vld [vmem:[%s2] sm:$0xff]
    %v51 = vld [vmem:[%s3] sm:$0xff]
    %v52 = vmul.f32 %v51, %v49
    %v53 = vsub.f32 %v50, %v52
    %55 = vset.pattern.permute.xlu0 0
    %56 = vperm.xlu0 %55, %v49
    %v57 = vpop.permute.xlu0 %56
    %v59 = vmul.f32 %v41, %v57
    %v60 = vmul.f32 %v42, %v57
    %v61 = vmul.f32 %v43, %v57
    %v62 = vmul.f32 %v44, %v57
    %64 = vset.pattern.permute.xlu0 0
    %65 = vperm.xlu0 %64, %v53
    %v66 = vpop.permute.xlu0 %65
    %v68 = vadd.f32 %v59, %v66
    %v69 = vadd.f32 %v60, %v66
    %v70 = vadd.f32 %v61, %v66
    %v71 = vadd.f32 %v62, %v66
    %v72 = vmax.f32 %v68, 0.0
    %v73 = vmax.f32 %v69, 0.0
    %v74 = vmax.f32 %v70, 0.0
    %v75 = vmax.f32 %v71, 0.0
    %v76 = vld [vmem:[%s6] ss:$2 sm:$0xf]
    %s77 = scalar_lea.vmem %s6, 1
    %v78 = vld [vmem:[%s77] ss:$2 sm:$0xf]
    %vm79 = vcmp.ge.s32.totalorder %v76, 1
    %vm80 = vcmp.lt.s32.totalorder %v76, 15
    %vm81 = vcmp.ge.s32.totalorder %v78, 1
    %vm82 = vcmp.lt.s32.totalorder %v78, 15
    %83 = vrot.lane.b32.xlu0 %v72, 17
    %v84 = vpop.permute.xlu0 %83
    %85 = vrot.lane.b32.xlu0 %v73, 17
    %v86 = vpop.permute.xlu0 %85
    %87 = vrot.lane.b32.xlu0 %v74, 17
    %v88 = vpop.permute.xlu0 %87
    %89 = vrot.lane.b32.xlu0 %v75, 17
    %v90 = vpop.permute.xlu0 %89
    %v91 = vlaneseq
    %v92 = vand.u32 %v91, 127
    %vm93 = vcmp.lt.s32.totalorder %v92, 17
    %v94 = vsel %vm93, %v88, %v90
    %v95 = vsel %vm93, %v86, %v88
    %v96 = vsel %vm93, %v84, %v86
    %v97 = vsel %vm93, %v90, %v84
    %vm98 = vmand %vm79, %vm81
    %v99 = vsel %vm98, 1, 0
    %v100 = vlaneseq
    %v101 = vshrl.u32 %v100, 7
    %v102 = vsub.s32 0, %v101
    %v103 = vrot.slane %v99, %v102
    %v104 = vlaneseq
    %v105 = vshrl.u32 %v104, 7
    %v106 = vsub.s32 1, %v105
    %v107 = vrot.slane %v99, %v106
    %v108 = vlaneseq
    %v109 = vshrl.u32 %v108, 7
    %v110 = vsub.s32 2, %v109
    %v111 = vrot.slane %v99, %v110
    %v112 = vlaneseq
    %v113 = vshrl.u32 %v112, 7
    %v114 = vsub.s32 3, %v113
    %v115 = vrot.slane %v99, %v114
    %vm116 = vcmp.eq.s32.totalorder %v103, 1
    %vm117 = vcmp.eq.s32.totalorder %v107, 1
    %vm118 = vcmp.eq.s32.totalorder %v111, 1
    %vm119 = vcmp.eq.s32.totalorder %v115, 1
    %v120 = vsel %vm116, %v97, 0.0
    %v121 = vsel %vm117, %v96, 0.0
    %v122 = vsel %vm118, %v95, 0.0
    %v123 = vsel %vm119, %v94, 0.0
    %124 = vrot.lane.b32.xlu0 %v72, 16
    %v125 = vpop.permute.xlu0 %124
    %126 = vrot.lane.b32.xlu0 %v73, 16
    %v127 = vpop.permute.xlu0 %126
    %128 = vrot.lane.b32.xlu0 %v74, 16
    %v129 = vpop.permute.xlu0 %128
    %130 = vrot.lane.b32.xlu0 %v75, 16
    %v131 = vpop.permute.xlu0 %130
    %vm132 = vcmp.lt.s32.totalorder %v92, 16
    %v133 = vsel %vm132, %v129, %v131
    %v134 = vsel %vm132, %v127, %v129
    %v135 = vsel %vm132, %v125, %v127
    %v136 = vsel %vm132, %v131, %v125
    %v137 = vsel %vm79, 1, 0
    %v138 = vlaneseq
    %v139 = vshrl.u32 %v138, 7
    %v140 = vsub.s32 0, %v139
    %v141 = vrot.slane %v137, %v140
    %v142 = vlaneseq
    %v143 = vshrl.u32 %v142, 7
    %v144 = vsub.s32 1, %v143
    %v145 = vrot.slane %v137, %v144
    %v146 = vlaneseq
    %v147 = vshrl.u32 %v146, 7
    %v148 = vsub.s32 2, %v147
    %v149 = vrot.slane %v137, %v148
    %v150 = vlaneseq
    %v151 = vshrl.u32 %v150, 7
    %v152 = vsub.s32 3, %v151
    %v153 = vrot.slane %v137, %v152
    %vm154 = vcmp.eq.s32.totalorder %v141, 1
    %vm155 = vcmp.eq.s32.totalorder %v145, 1
    %vm156 = vcmp.eq.s32.totalorder %v149, 1
    %vm157 = vcmp.eq.s32.totalorder %v153, 1
    %v158 = vsel %vm154, %v136, 0.0
    %v159 = vsel %vm155, %v135, 0.0
    %v160 = vsel %vm156, %v134, 0.0
    %v161 = vsel %vm157, %v133, 0.0
    %162 = vrot.lane.b32.xlu0 %v72, 15
    %v163 = vpop.permute.xlu0 %162
    %164 = vrot.lane.b32.xlu0 %v73, 15
    %v165 = vpop.permute.xlu0 %164
    %166 = vrot.lane.b32.xlu0 %v74, 15
    %v167 = vpop.permute.xlu0 %166
    %168 = vrot.lane.b32.xlu0 %v75, 15
    %v169 = vpop.permute.xlu0 %168
    %vm170 = vcmp.lt.s32.totalorder %v92, 15
    %v171 = vsel %vm170, %v167, %v169
    %v172 = vsel %vm170, %v165, %v167
    %v173 = vsel %vm170, %v163, %v165
    %v174 = vsel %vm170, %v169, %v163
    %vm175 = vmand %vm79, %vm82
    %v176 = vsel %vm175, 1, 0
    %v177 = vlaneseq
    %v178 = vshrl.u32 %v177, 7
    %v179 = vsub.s32 0, %v178
    %v180 = vrot.slane %v176, %v179
    %v181 = vlaneseq
    %v182 = vshrl.u32 %v181, 7
    %v183 = vsub.s32 1, %v182
    %v184 = vrot.slane %v176, %v183
    %v185 = vlaneseq
    %v186 = vshrl.u32 %v185, 7
    %v187 = vsub.s32 2, %v186
    %v188 = vrot.slane %v176, %v187
    %v189 = vlaneseq
    %v190 = vshrl.u32 %v189, 7
    %v191 = vsub.s32 3, %v190
    %v192 = vrot.slane %v176, %v191
    %vm193 = vcmp.eq.s32.totalorder %v180, 1
    %vm194 = vcmp.eq.s32.totalorder %v184, 1
    %vm195 = vcmp.eq.s32.totalorder %v188, 1
    %vm196 = vcmp.eq.s32.totalorder %v192, 1
    %v197 = vsel %vm193, %v174, 0.0
    %v198 = vsel %vm194, %v173, 0.0
    %v199 = vsel %vm195, %v172, 0.0
    %v200 = vsel %vm196, %v171, 0.0
    %v201 = vld [vmem:[#allocation2] sm:$0xff]
    %202 = vrot.lane.b32.xlu0 %v72, 1
    %v203 = vpop.permute.xlu0 %202
    %204 = vrot.lane.b32.xlu0 %v73, 1
    %v205 = vpop.permute.xlu0 %204
    %206 = vrot.lane.b32.xlu0 %v74, 1
    %v207 = vpop.permute.xlu0 %206
    %208 = vrot.lane.b32.xlu0 %v75, 1
    %v209 = vpop.permute.xlu0 %208
    %vm210 = vcmp.lt.s32.totalorder %v92, 1
    %v211 = vsel %vm210, %v207, %v209
    %v212 = vsel %vm210, %v205, %v207
    %v213 = vsel %vm210, %v203, %v205
    %v214 = vsel %vm210, %v209, %v203
    %v215 = vsel %vm81, 1, 0
    %v216 = vlaneseq
    %v217 = vshrl.u32 %v216, 7
    %v218 = vsub.s32 0, %v217
    %v219 = vrot.slane %v215, %v218
    %v220 = vlaneseq
    %v221 = vshrl.u32 %v220, 7
    %v222 = vsub.s32 1, %v221
    %v223 = vrot.slane %v215, %v222
    %v224 = vlaneseq
    %v225 = vshrl.u32 %v224, 7
    %v226 = vsub.s32 2, %v225
    %v227 = vrot.slane %v215, %v226
    %v228 = vlaneseq
    %v229 = vshrl.u32 %v228, 7
    %v230 = vsub.s32 3, %v229
    %v231 = vrot.slane %v215, %v230
    %vm232 = vcmp.eq.s32.totalorder %v219, 1
    %vm233 = vcmp.eq.s32.totalorder %v223, 1
    %vm234 = vcmp.eq.s32.totalorder %v227, 1
    %vm235 = vcmp.eq.s32.totalorder %v231, 1
    %v236 = vsel %vm232, %v214, 0.0
    %v237 = vsel %vm233, %v213, 0.0
    %v238 = vsel %vm234, %v212, 0.0
    %v239 = vsel %vm235, %v211, 0.0
    %240 = vrot.lane.b32.xlu0 %v72, 127
    %v241 = vpop.permute.xlu0 %240
    %242 = vrot.lane.b32.xlu0 %v73, 127
    %v243 = vpop.permute.xlu0 %242
    %244 = vrot.lane.b32.xlu0 %v74, 127
    %v245 = vpop.permute.xlu0 %244
    %246 = vrot.lane.b32.xlu0 %v75, 127
    %v247 = vpop.permute.xlu0 %246
    %vm248 = vcmp.lt.s32.totalorder %v92, 127
    %v249 = vsel %vm248, %v245, %v247
    %v250 = vsel %vm248, %v243, %v245
    %v251 = vsel %vm248, %v241, %v243
    %v252 = vsel %vm248, %v247, %v241
    %v253 = vsel %vm82, 1, 0
    %v254 = vlaneseq
    %v255 = vshrl.u32 %v254, 7
    %v256 = vsub.s32 0, %v255
    %v257 = vrot.slane %v253, %v256
    %v258 = vlaneseq
    %v259 = vshrl.u32 %v258, 7
    %v260 = vsub.s32 1, %v259
    %v261 = vrot.slane %v253, %v260
    %v262 = vlaneseq
    %v263 = vshrl.u32 %v262, 7
    %v264 = vsub.s32 2, %v263
    %v265 = vrot.slane %v253, %v264
    %v266 = vlaneseq
    %v267 = vshrl.u32 %v266, 7
    %v268 = vsub.s32 3, %v267
    %v269 = vrot.slane %v253, %v268
    %vm270 = vcmp.eq.s32.totalorder %v257, 1
    %vm271 = vcmp.eq.s32.totalorder %v261, 1
    %vm272 = vcmp.eq.s32.totalorder %v265, 1
    %vm273 = vcmp.eq.s32.totalorder %v269, 1
    %v274 = vsel %vm270, %v251, 0.0
    %v275 = vsel %vm271, %v250, 0.0
    %v276 = vsel %vm272, %v249, 0.0
    %v277 = vsel %vm273, %v252, 0.0
    %s278 = scalar_lea.vmem [#allocation2], 8
    %v279 = vld [vmem:[%s278] sm:$0xff]
    %vm280 = vcmask 195584
    %v282 = vsel %vm280, %v279, 0
    %284 = vmatprep.subr.mxu0 %v237
    %285 = vmatpush1.msra.mxu0 %v236
    %286 = vmatprep.subr.mxu0 %v73
    %287 = vmatpush1.msra.mxu0 %v72
    %288 = vmatprep.subr.mxu0 %v275
    %289 = vmatpush1.msra.mxu0 %v274
    %290 = vmatprep.subr.mxu0 0.0
    %291 = vmatpush1.msra.mxu0 0.0
    %292 = vmatprep.subr.mxu0 0.0
    %293 = vmatpush1.msra.mxu0 0.0
    %294 = vmatprep.subr.mxu0 0.0
    %295 = vmatpush1.msra.mxu0 0.0
    %296 = vmatprep.subr.mxu0 0.0
    %297 = vmatpush1.msra.mxu0 0.0
    %298 = vmatprep.subr.mxu0 0.0
    %299 = vmatpush1.msra.mxu0 0.0
    %300 = vmatprep.subr.mxu0 0.0
    %301 = vmatpush1.msra.mxu0 0.0
    %302 = vmatprep.subr.mxu0 0.0
    %303 = vmatpush1.msra.mxu0 0.0
    %304 = vmatprep.subr.mxu0 0.0
    %305 = vmatpush1.msra.mxu0 0.0
    %306 = vmatprep.subr.mxu0 0.0
    %307 = vmatpush1.msra.mxu0 0.0
    %308 = vmatprep.subr.mxu0 0.0
    %309 = vmatpush1.msra.mxu0 0.0
    %310 = vmatprep.subr.mxu0 0.0
    %311 = vmatpush1.msra.mxu0 0.0
    %312 = vmatprep.subr.mxu0 0.0
    %313 = vmatpush1.msra.mxu0 0.0
    %314 = vmatprep.subr.mxu0 0.0
    %315 = vmatpush1.msra.mxu0 0.0
    %316 = vmatprep.subr.mxu0 0.0
    %317 = vmatpush1.msra.mxu0 0.0
    %318 = vmatprep.subr.mxu0 0.0
    %319 = vmatpush1.msra.mxu0 0.0
    %320 = vmatprep.subr.mxu0 0.0
    %321 = vmatpush1.msra.mxu0 0.0
    %322 = vmatprep.subr.mxu0 0.0
    %323 = vmatpush1.msra.mxu0 0.0
    %324 = vmatprep.subr.mxu0 0.0
    %325 = vmatpush1.msra.mxu0 0.0
    %326 = vmatprep.subr.mxu0 0.0
    %327 = vmatpush1.msra.mxu0 0.0
    %328 = vmatprep.subr.mxu0 0.0
    %329 = vmatpush1.msra.mxu0 0.0
    %330 = vmatprep.subr.mxu0 0.0
    %331 = vmatpush1.msra.mxu0 0.0
    %332 = vmatprep.subr.mxu0 0.0
    %333 = vmatpush1.msra.mxu0 0.0
    %334 = vmatprep.subr.mxu0 0.0
    %335 = vmatpush1.msra.mxu0 0.0
    %336 = vmatprep.subr.mxu0 0.0
    %337 = vmatpush1.msra.mxu0 0.0
    %338 = vmatprep.subr.mxu0 0.0
    %339 = vmatpush1.msra.mxu0 0.0
    %340 = vmatprep.subr.mxu0 0.0
    %341 = vmatpush1.msra.mxu0 0.0
    %342 = vmatprep.subr.mxu0 0.0
    %343 = vmatpush1.msra.mxu0 0.0
    %344 = vmatprep.subr.mxu0 0.0
    %345 = vmatpush1.msra.mxu0 0.0
    %346 = vmatprep.subr.mxu0 0.0
    %347 = vmatpush1.msra.mxu0 0.0
    %348 = vmatprep.mubr.f32.mxu0 0.0
    %349 = vmatmul.mubr.f32.gmra.mrb[0].mxu0 %v282
    %v350 = vpop.f32.mrb[0].mxu0
    %v351 = vadd.f32 0.0, %v350
    %v352 = vpop.f32.mrb[0].mxu0
    %v353 = vadd.f32 0.0, %v352
    %354 = vdwg.mxu0
    %355 = vmatprep.subr.mxu0 %v239
    %356 = vmatpush1.msra.mxu0 %v238
    %357 = vmatprep.subr.mxu0 %v75
    %358 = vmatpush1.msra.mxu0 %v74
    %359 = vmatprep.subr.mxu0 %v277
    %360 = vmatpush1.msra.mxu0 %v276
    %361 = vmatprep.subr.mxu0 0.0
    %362 = vmatpush1.msra.mxu0 0.0
    %363 = vmatprep.subr.mxu0 0.0
    %364 = vmatpush1.msra.mxu0 0.0
    %365 = vmatprep.subr.mxu0 0.0
    %366 = vmatpush1.msra.mxu0 0.0
    %367 = vmatprep.subr.mxu0 0.0
    %368 = vmatpush1.msra.mxu0 0.0
    %369 = vmatprep.subr.mxu0 0.0
    %370 = vmatpush1.msra.mxu0 0.0
    %371 = vmatprep.subr.mxu0 0.0
    %372 = vmatpush1.msra.mxu0 0.0
    %373 = vmatprep.subr.mxu0 0.0
    %374 = vmatpush1.msra.mxu0 0.0
    %375 = vmatprep.subr.mxu0 0.0
    %376 = vmatpush1.msra.mxu0 0.0
    %377 = vmatprep.subr.mxu0 0.0
    %378 = vmatpush1.msra.mxu0 0.0
    %379 = vmatprep.subr.mxu0 0.0
    %380 = vmatpush1.msra.mxu0 0.0
    %381 = vmatprep.subr.mxu0 0.0
    %382 = vmatpush1.msra.mxu0 0.0
    %383 = vmatprep.subr.mxu0 0.0
    %384 = vmatpush1.msra.mxu0 0.0
    %385 = vmatprep.subr.mxu0 0.0
    %386 = vmatpush1.msra.mxu0 0.0
    %387 = vmatprep.subr.mxu0 0.0
    %388 = vmatpush1.msra.mxu0 0.0
    %389 = vmatprep.subr.mxu0 0.0
    %390 = vmatpush1.msra.mxu0 0.0
    %391 = vmatprep.subr.mxu0 0.0
    %392 = vmatpush1.msra.mxu0 0.0
    %393 = vmatprep.subr.mxu0 0.0
    %394 = vmatpush1.msra.mxu0 0.0
    %395 = vmatprep.subr.mxu0 0.0
    %396 = vmatpush1.msra.mxu0 0.0
    %397 = vmatprep.subr.mxu0 0.0
    %398 = vmatpush1.msra.mxu0 0.0
    %399 = vmatprep.subr.mxu0 0.0
    %400 = vmatpush1.msra.mxu0 0.0
    %401 = vmatprep.subr.mxu0 0.0
    %402 = vmatpush1.msra.mxu0 0.0
    %403 = vmatprep.subr.mxu0 0.0
    %404 = vmatpush1.msra.mxu0 0.0
    %405 = vmatprep.subr.mxu0 0.0
    %406 = vmatpush1.msra.mxu0 0.0
    %407 = vmatprep.subr.mxu0 0.0
    %408 = vmatpush1.msra.mxu0 0.0
    %409 = vmatprep.subr.mxu0 0.0
    %410 = vmatpush1.msra.mxu0 0.0
    %411 = vmatprep.subr.mxu0 0.0
    %412 = vmatpush1.msra.mxu0 0.0
    %413 = vmatprep.subr.mxu0 0.0
    %414 = vmatpush1.msra.mxu0 0.0
    %415 = vmatprep.subr.mxu0 0.0
    %416 = vmatpush1.msra.mxu0 0.0
    %417 = vmatprep.subr.mxu0 0.0
    %418 = vmatpush1.msra.mxu0 0.0
    %419 = vmatprep.mubr.f32.mxu0 0.0
    %420 = vmatmul.mubr.f32.gmra.mrb[0].mxu0 %v282
    %v421 = vpop.f32.mrb[0].mxu0
    %v422 = vadd.f32 0.0, %v421
    %v423 = vpop.f32.mrb[0].mxu0
    %v424 = vadd.f32 0.0, %v423
    %425 = vdwg.mxu0
    %v427 = vsel %vm280, %v201, 0
    %429 = vmatprep.subr.mxu0 %v121
    %430 = vmatpush1.msra.mxu0 %v120
    %431 = vmatprep.subr.mxu0 %v159
    %432 = vmatpush1.msra.mxu0 %v158
    %433 = vmatprep.subr.mxu0 %v198
    %434 = vmatpush1.msra.mxu0 %v197
    %435 = vmatprep.subr.mxu0 0.0
    %436 = vmatpush1.msra.mxu0 0.0
    %437 = vmatprep.subr.mxu0 0.0
    %438 = vmatpush1.msra.mxu0 0.0
    %439 = vmatprep.subr.mxu0 0.0
    %440 = vmatpush1.msra.mxu0 0.0
    %441 = vmatprep.subr.mxu0 0.0
    %442 = vmatpush1.msra.mxu0 0.0
    %443 = vmatprep.subr.mxu0 0.0
    %444 = vmatpush1.msra.mxu0 0.0
    %445 = vmatprep.subr.mxu0 0.0
    %446 = vmatpush1.msra.mxu0 0.0
    %447 = vmatprep.subr.mxu0 0.0
    %448 = vmatpush1.msra.mxu0 0.0
    %449 = vmatprep.subr.mxu0 0.0
    %450 = vmatpush1.msra.mxu0 0.0
    %451 = vmatprep.subr.mxu0 0.0
    %452 = vmatpush1.msra.mxu0 0.0
    %453 = vmatprep.subr.mxu0 0.0
    %454 = vmatpush1.msra.mxu0 0.0
    %455 = vmatprep.subr.mxu0 0.0
    %456 = vmatpush1.msra.mxu0 0.0
    %457 = vmatprep.subr.mxu0 0.0
    %458 = vmatpush1.msra.mxu0 0.0
    %459 = vmatprep.subr.mxu0 0.0
    %460 = vmatpush1.msra.mxu0 0.0
    %461 = vmatprep.subr.mxu0 0.0
    %462 = vmatpush1.msra.mxu0 0.0
    %463 = vmatprep.subr.mxu0 0.0
    %464 = vmatpush1.msra.mxu0 0.0
    %465 = vmatprep.subr.mxu0 0.0
    %466 = vmatpush1.msra.mxu0 0.0
    %467 = vmatprep.subr.mxu0 0.0
    %468 = vmatpush1.msra.mxu0 0.0
    %469 = vmatprep.subr.mxu0 0.0
    %470 = vmatpush1.msra.mxu0 0.0
    %471 = vmatprep.subr.mxu0 0.0
    %472 = vmatpush1.msra.mxu0 0.0
    %473 = vmatprep.subr.mxu0 0.0
    %474 = vmatpush1.msra.mxu0 0.0
    %475 = vmatprep.subr.mxu0 0.0
    %476 = vmatpush1.msra.mxu0 0.0
    %477 = vmatprep.subr.mxu0 0.0
    %478 = vmatpush1.msra.mxu0 0.0
    %479 = vmatprep.subr.mxu0 0.0
    %480 = vmatpush1.msra.mxu0 0.0
    %481 = vmatprep.subr.mxu0 0.0
    %482 = vmatpush1.msra.mxu0 0.0
    %483 = vmatprep.subr.mxu0 0.0
    %484 = vmatpush1.msra.mxu0 0.0
    %485 = vmatprep.subr.mxu0 0.0
    %486 = vmatpush1.msra.mxu0 0.0
    %487 = vmatprep.subr.mxu0 0.0
    %488 = vmatpush1.msra.mxu0 0.0
    %489 = vmatprep.subr.mxu0 0.0
    %490 = vmatpush1.msra.mxu0 0.0
    %491 = vmatprep.subr.mxu0 0.0
    %492 = vmatpush1.msra.mxu0 0.0
    %493 = vmatprep.mubr.f32.mxu0 0.0
    %494 = vmatmul.mubr.f32.gmra.mrb[0].mxu0 %v427
    %v495 = vpop.f32.mrb[0].mxu0
    %v496 = vadd.f32 %v351, %v495
    %v497 = vpop.f32.mrb[0].mxu0
    %v498 = vadd.f32 %v353, %v497
    %499 = vdwg.mxu0
    %500 = vmatprep.subr.mxu0 %v123
    %501 = vmatpush1.msra.mxu0 %v122
    %502 = vmatprep.subr.mxu0 %v161
    %503 = vmatpush1.msra.mxu0 %v160
    %504 = vmatprep.subr.mxu0 %v200
    %505 = vmatpush1.msra.mxu0 %v199
    %506 = vmatprep.subr.mxu0 0.0
    %507 = vmatpush1.msra.mxu0 0.0
    %508 = vmatprep.subr.mxu0 0.0
    %509 = vmatpush1.msra.mxu0 0.0
    %510 = vmatprep.subr.mxu0 0.0
    %511 = vmatpush1.msra.mxu0 0.0
    %512 = vmatprep.subr.mxu0 0.0
    %513 = vmatpush1.msra.mxu0 0.0
    %514 = vmatprep.subr.mxu0 0.0
    %515 = vmatpush1.msra.mxu0 0.0
    %516 = vmatprep.subr.mxu0 0.0
    %517 = vmatpush1.msra.mxu0 0.0
    %518 = vmatprep.subr.mxu0 0.0
    %519 = vmatpush1.msra.mxu0 0.0
    %520 = vmatprep.subr.mxu0 0.0
    %521 = vmatpush1.msra.mxu0 0.0
    %522 = vmatprep.subr.mxu0 0.0
    %523 = vmatpush1.msra.mxu0 0.0
    %524 = vmatprep.subr.mxu0 0.0
    %525 = vmatpush1.msra.mxu0 0.0
    %526 = vmatprep.subr.mxu0 0.0
    %527 = vmatpush1.msra.mxu0 0.0
    %528 = vmatprep.subr.mxu0 0.0
    %529 = vmatpush1.msra.mxu0 0.0
    %530 = vmatprep.subr.mxu0 0.0
    %531 = vmatpush1.msra.mxu0 0.0
    %532 = vmatprep.subr.mxu0 0.0
    %533 = vmatpush1.msra.mxu0 0.0
    %534 = vmatprep.subr.mxu0 0.0
    %535 = vmatpush1.msra.mxu0 0.0
    %536 = vmatprep.subr.mxu0 0.0
    %537 = vmatpush1.msra.mxu0 0.0
    %538 = vmatprep.subr.mxu0 0.0
    %539 = vmatpush1.msra.mxu0 0.0
    %540 = vmatprep.subr.mxu0 0.0
    %541 = vmatpush1.msra.mxu0 0.0
    %542 = vmatprep.subr.mxu0 0.0
    %543 = vmatpush1.msra.mxu0 0.0
    %544 = vmatprep.subr.mxu0 0.0
    %545 = vmatpush1.msra.mxu0 0.0
    %546 = vmatprep.subr.mxu0 0.0
    %547 = vmatpush1.msra.mxu0 0.0
    %548 = vmatprep.subr.mxu0 0.0
    %549 = vmatpush1.msra.mxu0 0.0
    %550 = vmatprep.subr.mxu0 0.0
    %551 = vmatpush1.msra.mxu0 0.0
    %552 = vmatprep.subr.mxu0 0.0
    %553 = vmatpush1.msra.mxu0 0.0
    %554 = vmatprep.subr.mxu0 0.0
    %555 = vmatpush1.msra.mxu0 0.0
    %556 = vmatprep.subr.mxu0 0.0
    %557 = vmatpush1.msra.mxu0 0.0
    %558 = vmatprep.subr.mxu0 0.0
    %559 = vmatpush1.msra.mxu0 0.0
    %560 = vmatprep.subr.mxu0 0.0
    %561 = vmatpush1.msra.mxu0 0.0
    %562 = vmatprep.subr.mxu0 0.0
    %563 = vmatpush1.msra.mxu0 0.0
    %564 = vmatprep.mubr.f32.mxu0 0.0
    %565 = vmatmul.mubr.f32.gmra.mrb[0].mxu0 %v427
    %v566 = vpop.f32.mrb[0].mxu0
    %v567 = vadd.f32 %v422, %v566
    %v568 = vpop.f32.mrb[0].mxu0
    %v569 = vadd.f32 %v424, %v568
    %570 = vdwg.mxu0
    %571 = vrot.lane.b32.xlu0 %v72, 113
    %v572 = vpop.permute.xlu0 %571
    %573 = vrot.lane.b32.xlu0 %v73, 113
    %v574 = vpop.permute.xlu0 %573
    %575 = vrot.lane.b32.xlu0 %v74, 113
    %v576 = vpop.permute.xlu0 %575
    %577 = vrot.lane.b32.xlu0 %v75, 113
    %v578 = vpop.permute.xlu0 %577
    %vm579 = vcmp.lt.s32.totalorder %v92, 113
    %v580 = vsel %vm579, %v576, %v578
    %v581 = vsel %vm579, %v574, %v576
    %v582 = vsel %vm579, %v572, %v574
    %v583 = vsel %vm579, %v578, %v572
    %vm584 = vmand %vm80, %vm81
    %v585 = vsel %vm584, 1, 0
    %v586 = vlaneseq
    %v587 = vshrl.u32 %v586, 7
    %v588 = vsub.s32 0, %v587
    %v589 = vrot.slane %v585, %v588
    %v590 = vlaneseq
    %v591 = vshrl.u32 %v590, 7
    %v592 = vsub.s32 1, %v591
    %v593 = vrot.slane %v585, %v592
    %v594 = vlaneseq
    %v595 = vshrl.u32 %v594, 7
    %v596 = vsub.s32 2, %v595
    %v597 = vrot.slane %v585, %v596
    %v598 = vlaneseq
    %v599 = vshrl.u32 %v598, 7
    %v600 = vsub.s32 3, %v599
    %v601 = vrot.slane %v585, %v600
    %vm602 = vcmp.eq.s32.totalorder %v589, 1
    %vm603 = vcmp.eq.s32.totalorder %v593, 1
    %vm604 = vcmp.eq.s32.totalorder %v597, 1
    %vm605 = vcmp.eq.s32.totalorder %v601, 1
    %v606 = vsel %vm602, %v582, 0.0
    %v607 = vsel %vm603, %v581, 0.0
    %v608 = vsel %vm604, %v580, 0.0
    %v609 = vsel %vm605, %v583, 0.0
    %610 = vrot.lane.b32.xlu0 %v72, 112
    %v611 = vpop.permute.xlu0 %610
    %612 = vrot.lane.b32.xlu0 %v73, 112
    %v613 = vpop.permute.xlu0 %612
    %614 = vrot.lane.b32.xlu0 %v74, 112
    %v615 = vpop.permute.xlu0 %614
    %616 = vrot.lane.b32.xlu0 %v75, 112
    %v617 = vpop.permute.xlu0 %616
    %vm618 = vcmp.lt.s32.totalorder %v92, 112
    %v619 = vsel %vm618, %v615, %v617
    %v620 = vsel %vm618, %v613, %v615
    %v621 = vsel %vm618, %v611, %v613
    %v622 = vsel %vm618, %v617, %v611
    %v623 = vsel %vm80, 1, 0
    %v624 = vlaneseq
    %v625 = vshrl.u32 %v624, 7
    %v626 = vsub.s32 0, %v625
    %v627 = vrot.slane %v623, %v626
    %v628 = vlaneseq
    %v629 = vshrl.u32 %v628, 7
    %v630 = vsub.s32 1, %v629
    %v631 = vrot.slane %v623, %v630
    %v632 = vlaneseq
    %v633 = vshrl.u32 %v632, 7
    %v634 = vsub.s32 2, %v633
    %v635 = vrot.slane %v623, %v634
    %v636 = vlaneseq
    %v637 = vshrl.u32 %v636, 7
    %v638 = vsub.s32 3, %v637
    %v639 = vrot.slane %v623, %v638
    %vm640 = vcmp.eq.s32.totalorder %v627, 1
    %vm641 = vcmp.eq.s32.totalorder %v631, 1
    %vm642 = vcmp.eq.s32.totalorder %v635, 1
    %vm643 = vcmp.eq.s32.totalorder %v639, 1
    %v644 = vsel %vm640, %v621, 0.0
    %v645 = vsel %vm641, %v620, 0.0
    %v646 = vsel %vm642, %v619, 0.0
    %v647 = vsel %vm643, %v622, 0.0
    %648 = vrot.lane.b32.xlu0 %v72, 111
    %v649 = vpop.permute.xlu0 %648
    %650 = vrot.lane.b32.xlu0 %v73, 111
    %v651 = vpop.permute.xlu0 %650
    %652 = vrot.lane.b32.xlu0 %v74, 111
    %v653 = vpop.permute.xlu0 %652
    %654 = vrot.lane.b32.xlu0 %v75, 111
    %v655 = vpop.permute.xlu0 %654
    %vm656 = vcmp.lt.s32.totalorder %v92, 111
    %v657 = vsel %vm656, %v653, %v655
    %v658 = vsel %vm656, %v651, %v653
    %v659 = vsel %vm656, %v649, %v651
    %v660 = vsel %vm656, %v655, %v649
    %vm661 = vmand %vm80, %vm82
    %v662 = vsel %vm661, 1, 0
    %v663 = vlaneseq
    %v664 = vshrl.u32 %v663, 7
    %v665 = vsub.s32 0, %v664
    %v666 = vrot.slane %v662, %v665
    %v667 = vlaneseq
    %v668 = vshrl.u32 %v667, 7
    %v669 = vsub.s32 1, %v668
    %v670 = vrot.slane %v662, %v669
    %v671 = vlaneseq
    %v672 = vshrl.u32 %v671, 7
    %v673 = vsub.s32 2, %v672
    %v674 = vrot.slane %v662, %v673
    %v675 = vlaneseq
    %v676 = vshrl.u32 %v675, 7
    %v677 = vsub.s32 3, %v676
    %v678 = vrot.slane %v662, %v677
    %vm679 = vcmp.eq.s32.totalorder %v666, 1
    %vm680 = vcmp.eq.s32.totalorder %v670, 1
    %vm681 = vcmp.eq.s32.totalorder %v674, 1
    %vm682 = vcmp.eq.s32.totalorder %v678, 1
    %v683 = vsel %vm679, %v659, 0.0
    %v684 = vsel %vm680, %v658, 0.0
    %v685 = vsel %vm681, %v657, 0.0
    %v686 = vsel %vm682, %v660, 0.0
    %s687 = scalar_lea.vmem [#allocation2], 16
    %v688 = vld [vmem:[%s687] sm:$0xff]
    %v690 = vsel %vm280, %v688, 0
    %692 = vmatprep.subr.mxu0 %v607
    %693 = vmatpush1.msra.mxu0 %v606
    %694 = vmatprep.subr.mxu0 %v645
    %695 = vmatpush1.msra.mxu0 %v644
    %696 = vmatprep.subr.mxu0 %v684
    %697 = vmatpush1.msra.mxu0 %v683
    %698 = vmatprep.subr.mxu0 0.0
    %699 = vmatpush1.msra.mxu0 0.0
    %700 = vmatprep.subr.mxu0 0.0
    %701 = vmatpush1.msra.mxu0 0.0
    %702 = vmatprep.subr.mxu0 0.0
    %703 = vmatpush1.msra.mxu0 0.0
    %704 = vmatprep.subr.mxu0 0.0
    %705 = vmatpush1.msra.mxu0 0.0
    %706 = vmatprep.subr.mxu0 0.0
    %707 = vmatpush1.msra.mxu0 0.0
    %708 = vmatprep.subr.mxu0 0.0
    %709 = vmatpush1.msra.mxu0 0.0
    %710 = vmatprep.subr.mxu0 0.0
    %711 = vmatpush1.msra.mxu0 0.0
    %712 = vmatprep.subr.mxu0 0.0
    %713 = vmatpush1.msra.mxu0 0.0
    %714 = vmatprep.subr.mxu0 0.0
    %715 = vmatpush1.msra.mxu0 0.0
    %716 = vmatprep.subr.mxu0 0.0
    %717 = vmatpush1.msra.mxu0 0.0
    %718 = vmatprep.subr.mxu0 0.0
    %719 = vmatpush1.msra.mxu0 0.0
    %720 = vmatprep.subr.mxu0 0.0
    %721 = vmatpush1.msra.mxu0 0.0
    %722 = vmatprep.subr.mxu0 0.0
    %723 = vmatpush1.msra.mxu0 0.0
    %724 = vmatprep.subr.mxu0 0.0
    %725 = vmatpush1.msra.mxu0 0.0
    %726 = vmatprep.subr.mxu0 0.0
    %727 = vmatpush1.msra.mxu0 0.0
    %728 = vmatprep.subr.mxu0 0.0
    %729 = vmatpush1.msra.mxu0 0.0
    %730 = vmatprep.subr.mxu0 0.0
    %731 = vmatpush1.msra.mxu0 0.0
    %732 = vmatprep.subr.mxu0 0.0
    %733 = vmatpush1.msra.mxu0 0.0
    %734 = vmatprep.subr.mxu0 0.0
    %735 = vmatpush1.msra.mxu0 0.0
    %736 = vmatprep.subr.mxu0 0.0
    %737 = vmatpush1.msra.mxu0 0.0
    %738 = vmatprep.subr.mxu0 0.0
    %739 = vmatpush1.msra.mxu0 0.0
    %740 = vmatprep.subr.mxu0 0.0
    %741 = vmatpush1.msra.mxu0 0.0
    %742 = vmatprep.subr.mxu0 0.0
    %743 = vmatpush1.msra.mxu0 0.0
    %744 = vmatprep.subr.mxu0 0.0
    %745 = vmatpush1.msra.mxu0 0.0
    %746 = vmatprep.subr.mxu0 0.0
    %747 = vmatpush1.msra.mxu0 0.0
    %748 = vmatprep.subr.mxu0 0.0
    %749 = vmatpush1.msra.mxu0 0.0
    %750 = vmatprep.subr.mxu0 0.0
    %751 = vmatpush1.msra.mxu0 0.0
    %752 = vmatprep.subr.mxu0 0.0
    %753 = vmatpush1.msra.mxu0 0.0
    %754 = vmatprep.subr.mxu0 0.0
    %755 = vmatpush1.msra.mxu0 0.0
    %756 = vmatprep.mubr.f32.mxu0 0.0
    %757 = vmatmul.mubr.f32.gmra.mrb[0].mxu0 %v690
    %v758 = vpop.f32.mrb[0].mxu0
    %v759 = vadd.f32 0.0, %v758
    %v760 = vpop.f32.mrb[0].mxu0
    %v761 = vadd.f32 0.0, %v760
    %762 = vdwg.mxu0
    %763 = vmatprep.subr.mxu0 %v609
    %764 = vmatpush1.msra.mxu0 %v608
    %765 = vmatprep.subr.mxu0 %v647
    %766 = vmatpush1.msra.mxu0 %v646
    %767 = vmatprep.subr.mxu0 %v686
    %768 = vmatpush1.msra.mxu0 %v685
    %769 = vmatprep.subr.mxu0 0.0
    %770 = vmatpush1.msra.mxu0 0.0
    %771 = vmatprep.subr.mxu0 0.0
    %772 = vmatpush1.msra.mxu0 0.0
    %773 = vmatprep.subr.mxu0 0.0
    %774 = vmatpush1.msra.mxu0 0.0
    %775 = vmatprep.subr.mxu0 0.0
    %776 = vmatpush1.msra.mxu0 0.0
    %777 = vmatprep.subr.mxu0 0.0
    %778 = vmatpush1.msra.mxu0 0.0
    %779 = vmatprep.subr.mxu0 0.0
    %780 = vmatpush1.msra.mxu0 0.0
    %781 = vmatprep.subr.mxu0 0.0
    %782 = vmatpush1.msra.mxu0 0.0
    %783 = vmatprep.subr.mxu0 0.0
    %784 = vmatpush1.msra.mxu0 0.0
    %785 = vmatprep.subr.mxu0 0.0
    %786 = vmatpush1.msra.mxu0 0.0
    %787 = vmatprep.subr.mxu0 0.0
    %788 = vmatpush1.msra.mxu0 0.0
    %789 = vmatprep.subr.mxu0 0.0
    %790 = vmatpush1.msra.mxu0 0.0
    %791 = vmatprep.subr.mxu0 0.0
    %792 = vmatpush1.msra.mxu0 0.0
    %793 = vmatprep.subr.mxu0 0.0
    %794 = vmatpush1.msra.mxu0 0.0
    %795 = vmatprep.subr.mxu0 0.0
    %796 = vmatpush1.msra.mxu0 0.0
    %797 = vmatprep.subr.mxu0 0.0
    %798 = vmatpush1.msra.mxu0 0.0
    %799 = vmatprep.subr.mxu0 0.0
    %800 = vmatpush1.msra.mxu0 0.0
    %801 = vmatprep.subr.mxu0 0.0
    %802 = vmatpush1.msra.mxu0 0.0
    %803 = vmatprep.subr.mxu0 0.0
    %804 = vmatpush1.msra.mxu0 0.0
    %805 = vmatprep.subr.mxu0 0.0
    %806 = vmatpush1.msra.mxu0 0.0
    %807 = vmatprep.subr.mxu0 0.0
    %808 = vmatpush1.msra.mxu0 0.0
    %809 = vmatprep.subr.mxu0 0.0
    %810 = vmatpush1.msra.mxu0 0.0
    %811 = vmatprep.subr.mxu0 0.0
    %812 = vmatpush1.msra.mxu0 0.0
    %813 = vmatprep.subr.mxu0 0.0
    %814 = vmatpush1.msra.mxu0 0.0
    %815 = vmatprep.subr.mxu0 0.0
    %816 = vmatpush1.msra.mxu0 0.0
    %817 = vmatprep.subr.mxu0 0.0
    %818 = vmatpush1.msra.mxu0 0.0
    %819 = vmatprep.subr.mxu0 0.0
    %820 = vmatpush1.msra.mxu0 0.0
    %821 = vmatprep.subr.mxu0 0.0
    %822 = vmatpush1.msra.mxu0 0.0
    %823 = vmatprep.subr.mxu0 0.0
    %824 = vmatpush1.msra.mxu0 0.0
    %825 = vmatprep.subr.mxu0 0.0
    %826 = vmatpush1.msra.mxu0 0.0
    %827 = vmatprep.mubr.f32.mxu0 0.0
    %828 = vmatmul.mubr.f32.gmra.mrb[0].mxu0 %v690
    %v829 = vpop.f32.mrb[0].mxu0
    %v830 = vadd.f32 0.0, %v829
    %v831 = vpop.f32.mrb[0].mxu0
    %v832 = vadd.f32 0.0, %v831
    %833 = vdwg.mxu0
    %v834 = vadd.f32 %v496, %v759
    %v835 = vadd.f32 %v498, %v761
    %v836 = vadd.f32 %v567, %v830
    %v837 = vadd.f32 %v569, %v832
    %838 = vrot.lane.b32.xlu0 %v41, 17
    %v839 = vpop.permute.xlu0 %838
    %840 = vrot.lane.b32.xlu0 %v42, 17
    %v841 = vpop.permute.xlu0 %840
    %842 = vrot.lane.b32.xlu0 %v43, 17
    %v843 = vpop.permute.xlu0 %842
    %844 = vrot.lane.b32.xlu0 %v44, 17
    %v845 = vpop.permute.xlu0 %844
    %v846 = vsel %vm93, %v843, %v845
    %v847 = vsel %vm93, %v841, %v843
    %v848 = vsel %vm93, %v839, %v841
    %v849 = vsel %vm93, %v845, %v839
    %v850 = vsel %vm116, %v849, -inf
    %v851 = vsel %vm117, %v848, -inf
    %v852 = vsel %vm118, %v847, -inf
    %v853 = vsel %vm119, %v846, -inf
    %v854 = vmax.f32 %v41, %v850
    %v855 = vmax.f32 %v42, %v851
    %v856 = vmax.f32 %v43, %v852
    %v857 = vmax.f32 %v44, %v853
    %858 = vrot.lane.b32.xlu0 %v41, 16
    %v859 = vpop.permute.xlu0 %858
    %860 = vrot.lane.b32.xlu0 %v42, 16
    %v861 = vpop.permute.xlu0 %860
    %862 = vrot.lane.b32.xlu0 %v43, 16
    %v863 = vpop.permute.xlu0 %862
    %864 = vrot.lane.b32.xlu0 %v44, 16
    %v865 = vpop.permute.xlu0 %864
    %v866 = vsel %vm132, %v863, %v865
    %v867 = vsel %vm132, %v861, %v863
    %v868 = vsel %vm132, %v859, %v861
    %v869 = vsel %vm132, %v865, %v859
    %v870 = vsel %vm154, %v869, -inf
    %v871 = vsel %vm155, %v868, -inf
    %v872 = vsel %vm156, %v867, -inf
    %v873 = vsel %vm157, %v866, -inf
    %v874 = vmax.f32 %v854, %v870
    %v875 = vmax.f32 %v855, %v871
    %v876 = vmax.f32 %v856, %v872
    %v877 = vmax.f32 %v857, %v873
    %878 = vrot.lane.b32.xlu0 %v41, 15
    %v879 = vpop.permute.xlu0 %878
    %880 = vrot.lane.b32.xlu0 %v42, 15
    %v881 = vpop.permute.xlu0 %880
    %882 = vrot.lane.b32.xlu0 %v43, 15
    %v883 = vpop.permute.xlu0 %882
    %884 = vrot.lane.b32.xlu0 %v44, 15
    %v885 = vpop.permute.xlu0 %884
    %v886 = vsel %vm170, %v883, %v885
    %v887 = vsel %vm170, %v881, %v883
    %v888 = vsel %vm170, %v879, %v881
    %v889 = vsel %vm170, %v885, %v879
    %v890 = vsel %vm193, %v889, -inf
    %v891 = vsel %vm194, %v888, -inf
    %v892 = vsel %vm195, %v887, -inf
    %v893 = vsel %vm196, %v886, -inf
    %v894 = vmax.f32 %v874, %v890
    %v895 = vmax.f32 %v875, %v891
    %v896 = vmax.f32 %v876, %v892
    %v897 = vmax.f32 %v877, %v893
    %898 = vrot.lane.b32.xlu0 %v41, 1
    %v899 = vpop.permute.xlu0 %898
    %900 = vrot.lane.b32.xlu0 %v42, 1
    %v901 = vpop.permute.xlu0 %900
    %902 = vrot.lane.b32.xlu0 %v43, 1
    %v903 = vpop.permute.xlu0 %902
    %904 = vrot.lane.b32.xlu0 %v44, 1
    %v905 = vpop.permute.xlu0 %904
    %v906 = vsel %vm210, %v903, %v905
    %v907 = vsel %vm210, %v901, %v903
    %v908 = vsel %vm210, %v899, %v901
    %v909 = vsel %vm210, %v905, %v899
    %v910 = vsel %vm232, %v909, -inf
    %v911 = vsel %vm233, %v908, -inf
    %v912 = vsel %vm234, %v907, -inf
    %v913 = vsel %vm235, %v906, -inf
    %v914 = vmax.f32 %v894, %v910
    %v915 = vmax.f32 %v895, %v911
    %v916 = vmax.f32 %v896, %v912
    %v917 = vmax.f32 %v897, %v913
    %918 = vrot.lane.b32.xlu0 %v41, 127
    %v919 = vpop.permute.xlu0 %918
    %920 = vrot.lane.b32.xlu0 %v42, 127
    %v921 = vpop.permute.xlu0 %920
    %922 = vrot.lane.b32.xlu0 %v43, 127
    %v923 = vpop.permute.xlu0 %922
    %924 = vrot.lane.b32.xlu0 %v44, 127
    %v925 = vpop.permute.xlu0 %924
    %v926 = vsel %vm248, %v923, %v925
    %v927 = vsel %vm248, %v921, %v923
    %v928 = vsel %vm248, %v919, %v921
    %v929 = vsel %vm248, %v925, %v919
    %v930 = vsel %vm270, %v928, -inf
    %v931 = vsel %vm271, %v927, -inf
    %v932 = vsel %vm272, %v926, -inf
    %v933 = vsel %vm273, %v929, -inf
    %v934 = vmax.f32 %v914, %v930
    %v935 = vmax.f32 %v915, %v931
    %v936 = vmax.f32 %v916, %v932
    %v937 = vmax.f32 %v917, %v933
    %938 = vrot.lane.b32.xlu0 %v41, 113
    %v939 = vpop.permute.xlu0 %938
    %940 = vrot.lane.b32.xlu0 %v42, 113
    %v941 = vpop.permute.xlu0 %940
    %942 = vrot.lane.b32.xlu0 %v43, 113
    %v943 = vpop.permute.xlu0 %942
    %944 = vrot.lane.b32.xlu0 %v44, 113
    %v945 = vpop.permute.xlu0 %944
    %v946 = vsel %vm579, %v943, %v945
    %v947 = vsel %vm579, %v941, %v943
    %v948 = vsel %vm579, %v939, %v941
    %v949 = vsel %vm579, %v945, %v939
    %v950 = vsel %vm602, %v948, -inf
    %v951 = vsel %vm603, %v947, -inf
    %v952 = vsel %vm604, %v946, -inf
    %v953 = vsel %vm605, %v949, -inf
    %v954 = vmax.f32 %v934, %v950
    %v955 = vmax.f32 %v935, %v951
    %v956 = vmax.f32 %v936, %v952
    %v957 = vmax.f32 %v937, %v953
    %958 = vrot.lane.b32.xlu0 %v41, 112
    %v959 = vpop.permute.xlu0 %958
    %960 = vrot.lane.b32.xlu0 %v42, 112
    %v961 = vpop.permute.xlu0 %960
    %962 = vrot.lane.b32.xlu0 %v43, 112
    %v963 = vpop.permute.xlu0 %962
    %964 = vrot.lane.b32.xlu0 %v44, 112
    %v965 = vpop.permute.xlu0 %964
    %v966 = vsel %vm618, %v963, %v965
    %v967 = vsel %vm618, %v961, %v963
    %v968 = vsel %vm618, %v959, %v961
    %v969 = vsel %vm618, %v965, %v959
    %v970 = vsel %vm640, %v968, -inf
    %v971 = vsel %vm641, %v967, -inf
    %v972 = vsel %vm642, %v966, -inf
    %v973 = vsel %vm643, %v969, -inf
    %v974 = vmax.f32 %v954, %v970
    %v975 = vmax.f32 %v955, %v971
    %v976 = vmax.f32 %v956, %v972
    %v977 = vmax.f32 %v957, %v973
    %978 = vrot.lane.b32.xlu0 %v41, 111
    %v979 = vpop.permute.xlu0 %978
    %980 = vrot.lane.b32.xlu0 %v42, 111
    %v981 = vpop.permute.xlu0 %980
    %982 = vrot.lane.b32.xlu0 %v43, 111
    %v983 = vpop.permute.xlu0 %982
    %984 = vrot.lane.b32.xlu0 %v44, 111
    %v985 = vpop.permute.xlu0 %984
    %v986 = vsel %vm656, %v983, %v985
    %v987 = vsel %vm656, %v981, %v983
    %v988 = vsel %vm656, %v979, %v981
    %v989 = vsel %vm656, %v985, %v979
    %v990 = vsel %vm679, %v988, -inf
    %v991 = vsel %vm680, %v987, -inf
    %v992 = vsel %vm681, %v986, -inf
    %v993 = vsel %vm682, %v989, -inf
    %v994 = vmax.f32 %v974, %v990
    %v995 = vmax.f32 %v975, %v991
    %v996 = vmax.f32 %v976, %v992
    %v997 = vmax.f32 %v977, %v993
    %v998 = vadd.f32 %v834, %v994
    %v999 = vadd.f32 %v835, %v995
    %v1000 = vadd.f32 %v836, %v996
    %v1001 = vadd.f32 %v837, %v997
    %1002 = vst [vmem:[#allocation5] sm:$0xff] %v998
    %1003 = vst [vmem:[#allocation5 + $0x8] sm:$0xff] %v999
    %1004 = vst [vmem:[#allocation5 + $0x10] sm:$0xff] %v1000
    %1005 = vst [vmem:[#allocation5 + $0x18] sm:$0xff] %v1001
    // Predicated region
    $region34: #{tpu_custom_call.1} parent=1 // pred_check
      _
    $region35: #{tpu_custom_call.1} parent=1 // pred_check_branch
      %1007 = sbr.rel (0) target = $region37
    $region36: #{tpu_custom_call.1} parent=1 // pred_region
      %s1009 = ssub.s32 512, 512
      %1010 = vsyncadd [#allocation4], %s1009
      %s1012 = sshll.u32 [#allocation5], 4
      %s1013 = int_to_ptr.vmem [resolvable:$true] %s1012
      %1015 = dma.vmem_to_hbm [thread:$0]  %s1013, 512, %s7, [#allocation4]
    $region37: #{tpu_custom_call.1} parent=1 // pred_fallthru
      _
    // Predicated region
    $region38: #{tpu_custom_call.1} parent=1 // pred_check
      _
    $region39: #{tpu_custom_call.1} parent=1 // pred_check_branch
      %1017 = sbr.rel (0) target = $region41
    $region40: #{tpu_custom_call.1} parent=1 // pred_region
      %1018 = dma.done [#allocation4], 512
    $region41: #{tpu_custom_call.1} parent=1 // pred_fallthru
      _
    %1019 = vsyncpa [#allocation3], 1
    %1020 = vsyncpa [#allocation4], 1

</llo_original>
